<compile_context>
chip_gen: v6e
topology: v6e:2x2x1
jax: 0.10.0
libtpu: 0.0.40
codegen_flags: <defaults>
</compile_context>

<pallas_src>
import functools

import jax
import jax.numpy as jnp
from jax.experimental import pallas as pl
from jax.experimental.pallas import tpu as pltpu


# ------------------------------- fused kernel ------------------------------- #

def make_fused_rnn_kernel(num_layers: int, seq_len: int, batch: int):
    """Builds a kernel closing over the static layer count / seq len / batch.

    Ref order: x_tm [T*B, in], h0 [L, B, H],
               (wih_0, whh_0, b_0), ..., (wih_{L-1}, whh_{L-1}, b_{L-1}),
               w_fc [H, O_pad], b_fc [1, O_pad], out [B, O_pad],
               seq_scratch (VMEM, [T*B, H] f32)
    """

    def kernel(x_ref, h0_ref, *rest):
        wih_refs = rest[0:3 * num_layers:3]        # bf16 [in_l, H]
        whh_refs = rest[1:3 * num_layers:3]        # bf16 [H, H]
        b_refs = rest[2:3 * num_layers:3]          # f32  [1, H]  (b_ih + b_hh folded)
        wfc_ref = rest[3 * num_layers]             # bf16 [H, O_pad]
        bfc_ref = rest[3 * num_layers + 1]         # f32  [1, O_pad]
        out_ref = rest[3 * num_layers + 2]         # f32  [B, O_pad]
        seq_ref = rest[3 * num_layers + 3]         # f32  [T*B, H] VMEM scratch

        B, T = batch, seq_len

        h_last = None
        for l in range(num_layers):
            # ---- Hoisted whole-sequence input projection: ONE matmul per layer ----
            if l == 0:
                in_seq = x_ref[...]                                # bf16 [T*B, in]
            else:
                in_seq = seq_ref[...].astype(jnp.bfloat16)         # prev layer outputs
            proj = (
                jnp.dot(in_seq, wih_refs[l][...],
                        preferred_element_type=jnp.float32)
                + b_refs[l][...]                                   # bias broadcast once
            )                                                      # f32 [T*B, H]

            whh = whh_refs[l][...]                                 # bf16 [H, H]
            h = h0_ref[l]                                          # f32  [B, H]
            is_last_layer = l == num_layers - 1

            # ---- Serial recurrence: only h @ Whh + proj_t, tanh (f32 path) ----
            for t in range(T):
                pre = proj[t * B:(t + 1) * B, :] + jnp.dot(
                    h.astype(jnp.bfloat16), whh,
                    preferred_element_type=jnp.float32)
                h = jnp.tanh(pre)
                if not is_last_layer:
                    seq_ref[t * B:(t + 1) * B, :] = h              # stage for next layer
            h_last = h

        # ---- Final Linear fused into the same kernel (lane-dense padded output) ----
        out_ref[...] = (
            jnp.dot(h_last.astype(jnp.bfloat16), wfc_ref[...],
                    preferred_element_type=jnp.float32)
            + bfc_ref[...]
        )

    return kernel


# --------------------------------- wrapper ---------------------------------- #

@functools.partial(jax.jit, static_argnames=("output_size",))
def simple_rnn_forward(params, x, output_size, hx=None):
    """x: [batch, seq, input_size] -> [batch, output_size] (matches PyTorch forward)."""
    B, T, In = x.shape
    num_layers = len(params["cells"])
    H = params["cells"][0]["whh_t"].shape[-1]
    O_pad = params["fc"]["w_t"].shape[-1]

    h0 = (jnp.zeros((num_layers, B, H), jnp.float32)
          if hx is None else hx.astype(jnp.float32))

    # Time-major flatten so rows t*B:(t+1)*B are all batch items at timestep t;
    # cast the MXU operand to bf16 up-front (halves x DMA traffic too).
    x_tm = jnp.transpose(x, (1, 0, 2)).reshape(T * B, In).astype(jnp.bfloat16)

    inputs = [x_tm, h0]
    for cell in params["cells"]:
        inputs += [cell["wih_t"], cell["whh_t"], cell["b"]]
    inputs += [params["fc"]["w_t"], params["fc"]["b"]]

    # Cost hint for XLA scheduling around the custom call.
    in_dims = [In] + [H] * (num_layers - 1)
    flops = (sum(2 * T * B * d * H for d in in_dims)    # hoisted input projections
             + 2 * T * B * num_layers * H * H           # recurrent matmuls
             + 2 * B * H * O_pad)                       # final Linear
    bytes_accessed = (sum(int(a.size) * a.dtype.itemsize for a in inputs)
                      + B * O_pad * 4)

    vmem = pl.BlockSpec(memory_space=pltpu.MemorySpace.VMEM)
    out_pad = pl.pallas_call(
        make_fused_rnn_kernel(num_layers, T, B),
        out_shape=jax.ShapeDtypeStruct((B, O_pad), jnp.float32),
        in_specs=[vmem] * len(inputs),
        out_specs=vmem,
        scratch_shapes=[pltpu.VMEM((T * B, H), jnp.float32)],
        compiler_params=pltpu.CompilerParams(vmem_limit_bytes=32 * 1024 * 1024),
        cost_estimate=pl.CostEstimate(flops=flops,
                                      transcendentals=T * B * num_layers * H,
                                      bytes_accessed=bytes_accessed),
    )(*inputs)
    return out_pad[:, :output_size]


# ------------------------------- parameter init ------------------------------ #

def init_simple_rnn_params(key, input_size, hidden_size, num_layers, output_size,
                           bias=True):
    """PyTorch-style U(-1/sqrt(H), 1/sqrt(H)) init.

    Returns (params_bf16, params_f32): the bf16 dict feeds the kernel (weights
    pre-transposed, fc zero-padded to a lane-dense 128 multiple); the f32 dict is
    the unpadded full-precision copy for the fidelity reference.
    """
    std = 1.0 / (hidden_size ** 0.5)
    o_pad = ((output_size + 127) // 128) * 128
    cells_bf16, cells_f32 = [], []
    for layer in range(num_layers):
        in_dim = input_size if layer == 0 else hidden_size
        key, k1, k2, k3, k4 = jax.random.split(key, 5)
        w_ih = jax.random.uniform(k1, (hidden_size, in_dim), jnp.float32, -std, std)
        w_hh = jax.random.uniform(k2, (hidden_size, hidden_size), jnp.float32, -std, std)
        if bias:
            b_ih = jax.random.uniform(k3, (hidden_size,), jnp.float32, -std, std)
            b_hh = jax.random.uniform(k4, (hidden_size,), jnp.float32, -std, std)
        else:
            b_ih = jnp.zeros((hidden_size,), jnp.float32)
            b_hh = jnp.zeros((hidden_size,), jnp.float32)
        b = (b_ih + b_hh).reshape(1, -1)                           # f32 [1, H]
        cells_f32.append({"wih_t": w_ih.T, "whh_t": w_hh.T, "b": b})
        cells_bf16.append({"wih_t": w_ih.T.astype(jnp.bfloat16),
                           "whh_t": w_hh.T.astype(jnp.bfloat16),
                           "b": b})
    key, k1, k2 = jax.random.split(key, 3)
    w_fc = jax.random.uniform(k1, (output_size, hidden_size), jnp.float32, -std, std)
    b_fc = jax.random.uniform(k2, (output_size,), jnp.float32, -std, std)
    fc_f32 = {"w_t": w_fc.T, "b": b_fc.reshape(1, -1)}
    w_fc_pad = jnp.zeros((hidden_size, o_pad), jnp.float32).at[:, :output_size].set(w_fc.T)
    b_fc_pad = jnp.zeros((1, o_pad), jnp.float32).at[:, :output_size].set(b_fc)
    fc_bf16 = {"w_t": w_fc_pad.astype(jnp.bfloat16), "b": b_fc_pad}
    return ({"cells": cells_bf16, "fc": fc_bf16},
            {"cells": cells_f32, "fc": fc_f32})


# ------------------------------ reference (JAX) ------------------------------ #

def simple_rnn_reference(params, x):
    """Pure-JAX time-major reference mirroring the PyTorch forward.

    Matmul operands are cast to the stored weight dtype, so passing the bf16 kernel
    params reproduces the kernel's dtype strategy (tight check), while the f32 copy
    gives the full-precision PyTorch semantics (loose check)."""
    B, T, _ = x.shape
    cells = params["cells"]
    L = len(cells)
    H = cells[0]["whh_t"].shape[-1]
    h = [jnp.zeros((B, H), jnp.float32) for _ in range(L)]
    for t in range(T):
        inp = x[:, t, :]
        for l in range(L):
            c = cells[l]
            wd = c["wih_t"].dtype
            pre = (jnp.dot(inp.astype(wd), c["wih_t"], preferred_element_type=jnp.float32)
                   + jnp.dot(h[l].astype(wd), c["whh_t"], preferred_element_type=jnp.float32)
                   + c["b"])
            h[l] = jnp.tanh(pre)
            inp = h[l]
    wd = params["fc"]["w_t"].dtype
    return (jnp.dot(h[-1].astype(wd), params["fc"]["w_t"],
                    preferred_element_type=jnp.float32) + params["fc"]["b"])


# ----------------------------------- main ------------------------------------ #

if __name__ == "__main__":
    batch = 2
    seq = 8
    input_size = 16
    hidden_size = 32
    num_layers = 2
    output_size = 8

    key = jax.random.PRNGKey(0)
    key, kx, kp = jax.random.split(key, 3)
    x = jax.random.normal(kx, (batch, seq, input_size), jnp.float32)
    params, params_f32 = init_simple_rnn_params(kp, input_size, hidden_size,
                                                num_layers, output_size, bias=True)

    out = simple_rnn_forward(params, x, output_size)
    out = jax.block_until_ready(out)
    assert out.shape == (batch, output_size), out.shape

    # Tight check: reference using the exact same dtype strategy (bf16 MXU inputs,
    # f32 accumulation / tanh) -> validates the kernel restructuring itself.
    ref_bf16 = simple_rnn_reference(params, x)[:, :output_size]
    assert jnp.allclose(out, ref_bf16, atol=1e-4, rtol=1e-4), "mismatch vs bf16-mirror reference"

    # Loose check: full-precision (PyTorch-f32) reference -> bounds bf16-weight drift.
    ref_f32 = simple_rnn_reference(params_f32, x)
    assert jnp.allclose(out, ref_f32, atol=5e-2, rtol=5e-2), "mismatch vs f32 reference"

    print("KERNEL_OK")
</pallas_src>

<mosaic_0001>
module attributes {stable_mosaic.version = 11 : i64} {
  func.func @kernel(%arg0: memref<16x16xbf16, #tpu.memory_space<vmem>>, %arg1: memref<2x2x32xf32, #tpu.memory_space<vmem>>, %arg2: memref<16x32xbf16, #tpu.memory_space<vmem>>, %arg3: memref<32x32xbf16, #tpu.memory_space<vmem>>, %arg4: memref<1x32xf32, #tpu.memory_space<vmem>>, %arg5: memref<32x32xbf16, #tpu.memory_space<vmem>>, %arg6: memref<32x32xbf16, #tpu.memory_space<vmem>>, %arg7: memref<1x32xf32, #tpu.memory_space<vmem>>, %arg8: memref<32x128xbf16, #tpu.memory_space<vmem>>, %arg9: memref<1x128xf32, #tpu.memory_space<vmem>>, %arg10: memref<2x128xf32, #tpu.memory_space<vmem>>, %arg11: memref<16x32xf32, #tpu.memory_space<vmem>>) attributes {dimension_semantics = [], scalar_prefetch = 0 : i64, scratch_operands = 1 : i64, tpu.core_type = #tpu.core_type<tc>} {
    %c0 = arith.constant 0 : index
    %c0_0 = arith.constant 0 : index
    %0 = vector.load %arg0[%c0, %c0_0] : memref<16x16xbf16, #tpu.memory_space<vmem>>, vector<16x16xbf16>
    %c0_1 = arith.constant 0 : index
    %c0_2 = arith.constant 0 : index
    %1 = vector.load %arg2[%c0_1, %c0_2] : memref<16x32xbf16, #tpu.memory_space<vmem>>, vector<16x32xbf16>
    %cst = arith.constant dense<0.000000e+00> : vector<16x32xf32>
    %2 = tpu.matmul %0, %1, %cst {dimension_numbers = #tpu.dot_dimension_numbers<[1], [0], [0], [1], [0, 0, 1, 1], [], []>} : vector<16x16xbf16>, vector<16x32xbf16>, vector<16x32xf32> -> vector<16x32xf32>
    %c0_3 = arith.constant 0 : index
    %c0_4 = arith.constant 0 : index
    %3 = vector.load %arg4[%c0_3, %c0_4] : memref<1x32xf32, #tpu.memory_space<vmem>>, vector<1x32xf32>
    %4 = vector.broadcast %3 : vector<1x32xf32> to vector<16x32xf32>
    %5 = arith.addf %2, %4 : vector<16x32xf32>
    %c0_5 = arith.constant 0 : index
    %c0_6 = arith.constant 0 : index
    %6 = vector.load %arg3[%c0_5, %c0_6] : memref<32x32xbf16, #tpu.memory_space<vmem>>, vector<32x32xbf16>
    %c0_7 = arith.constant 0 : index
    %c0_8 = arith.constant 0 : index
    %c0_9 = arith.constant 0 : index
    %7 = vector.load %arg1[%c0_7, %c0_8, %c0_9] : memref<2x2x32xf32, #tpu.memory_space<vmem>>, vector<1x2x32xf32>
    %8 = vector.shape_cast %7 : vector<1x2x32xf32> to vector<2x32xf32>
    %9 = vector.extract_strided_slice %5 {offsets = [0, 0], sizes = [2, 32], strides = [1, 1]} : vector<16x32xf32> to vector<2x32xf32>
    %10 = arith.truncf %8 : vector<2x32xf32> to vector<2x32xbf16>
    %cst_10 = arith.constant dense<0.000000e+00> : vector<2x32xf32>
    %11 = tpu.matmul %10, %6, %cst_10 {dimension_numbers = #tpu.dot_dimension_numbers<[1], [0], [0], [1], [0, 0, 1, 1], [], []>} : vector<2x32xbf16>, vector<32x32xbf16>, vector<2x32xf32> -> vector<2x32xf32>
    %12 = arith.addf %9, %11 : vector<2x32xf32>
    %13 = math.tanh %12 : vector<2x32xf32>
    %c0_11 = arith.constant 0 : index
    %c0_12 = arith.constant 0 : index
    %14 = vector.load %arg11[%c0_11, %c0_12] : memref<16x32xf32, #tpu.memory_space<vmem>>, vector<2x32xf32>
    tpu.vector_store %arg11[%c0_11, %c0_12], %13 {strides = array<i32>} : memref<16x32xf32, #tpu.memory_space<vmem>>, vector<2x32xf32>,
    %15 = vector.extract_strided_slice %5 {offsets = [2, 0], sizes = [2, 32], strides = [1, 1]} : vector<16x32xf32> to vector<2x32xf32>
    %16 = arith.truncf %13 : vector<2x32xf32> to vector<2x32xbf16>
    %cst_13 = arith.constant dense<0.000000e+00> : vector<2x32xf32>
    %17 = tpu.matmul %16, %6, %cst_13 {dimension_numbers = #tpu.dot_dimension_numbers<[1], [0], [0], [1], [0, 0, 1, 1], [], []>} : vector<2x32xbf16>, vector<32x32xbf16>, vector<2x32xf32> -> vector<2x32xf32>
    %18 = arith.addf %15, %17 : vector<2x32xf32>
    %19 = math.tanh %18 : vector<2x32xf32>
    %c2 = arith.constant 2 : index
    %c0_14 = arith.constant 0 : index
    %20 = vector.load %arg11[%c2, %c0_14] : memref<16x32xf32, #tpu.memory_space<vmem>>, vector<2x32xf32>
    tpu.vector_store %arg11[%c2, %c0_14], %19 {strides = array<i32>} : memref<16x32xf32, #tpu.memory_space<vmem>>, vector<2x32xf32>,
    %21 = vector.extract_strided_slice %5 {offsets = [4, 0], sizes = [2, 32], strides = [1, 1]} : vector<16x32xf32> to vector<2x32xf32>
    %22 = arith.truncf %19 : vector<2x32xf32> to vector<2x32xbf16>
    %cst_15 = arith.constant dense<0.000000e+00> : vector<2x32xf32>
    %23 = tpu.matmul %22, %6, %cst_15 {dimension_numbers = #tpu.dot_dimension_numbers<[1], [0], [0], [1], [0, 0, 1, 1], [], []>} : vector<2x32xbf16>, vector<32x32xbf16>, vector<2x32xf32> -> vector<2x32xf32>
    %24 = arith.addf %21, %23 : vector<2x32xf32>
    %25 = math.tanh %24 : vector<2x32xf32>
    %c4 = arith.constant 4 : index
    %c0_16 = arith.constant 0 : index
    %26 = vector.load %arg11[%c4, %c0_16] : memref<16x32xf32, #tpu.memory_space<vmem>>, vector<2x32xf32>
    tpu.vector_store %arg11[%c4, %c0_16], %25 {strides = array<i32>} : memref<16x32xf32, #tpu.memory_space<vmem>>, vector<2x32xf32>,
    %27 = vector.extract_strided_slice %5 {offsets = [6, 0], sizes = [2, 32], strides = [1, 1]} : vector<16x32xf32> to vector<2x32xf32>
    %28 = arith.truncf %25 : vector<2x32xf32> to vector<2x32xbf16>
    %cst_17 = arith.constant dense<0.000000e+00> : vector<2x32xf32>
    %29 = tpu.matmul %28, %6, %cst_17 {dimension_numbers = #tpu.dot_dimension_numbers<[1], [0], [0], [1], [0, 0, 1, 1], [], []>} : vector<2x32xbf16>, vector<32x32xbf16>, vector<2x32xf32> -> vector<2x32xf32>
    %30 = arith.addf %27, %29 : vector<2x32xf32>
    %31 = math.tanh %30 : vector<2x32xf32>
    %c6 = arith.constant 6 : index
    %c0_18 = arith.constant 0 : index
    %32 = vector.load %arg11[%c6, %c0_18] : memref<16x32xf32, #tpu.memory_space<vmem>>, vector<2x32xf32>
    tpu.vector_store %arg11[%c6, %c0_18], %31 {strides = array<i32>} : memref<16x32xf32, #tpu.memory_space<vmem>>, vector<2x32xf32>,
    %33 = vector.extract_strided_slice %5 {offsets = [8, 0], sizes = [2, 32], strides = [1, 1]} : vector<16x32xf32> to vector<2x32xf32>
    %34 = arith.truncf %31 : vector<2x32xf32> to vector<2x32xbf16>
    %cst_19 = arith.constant dense<0.000000e+00> : vector<2x32xf32>
    %35 = tpu.matmul %34, %6, %cst_19 {dimension_numbers = #tpu.dot_dimension_numbers<[1], [0], [0], [1], [0, 0, 1, 1], [], []>} : vector<2x32xbf16>, vector<32x32xbf16>, vector<2x32xf32> -> vector<2x32xf32>
    %36 = arith.addf %33, %35 : vector<2x32xf32>
    %37 = math.tanh %36 : vector<2x32xf32>
    %c8 = arith.constant 8 : index
    %c0_20 = arith.constant 0 : index
    %38 = vector.load %arg11[%c8, %c0_20] : memref<16x32xf32, #tpu.memory_space<vmem>>, vector<2x32xf32>
    tpu.vector_store %arg11[%c8, %c0_20], %37 {strides = array<i32>} : memref<16x32xf32, #tpu.memory_space<vmem>>, vector<2x32xf32>,
    %39 = vector.extract_strided_slice %5 {offsets = [10, 0], sizes = [2, 32], strides = [1, 1]} : vector<16x32xf32> to vector<2x32xf32>
    %40 = arith.truncf %37 : vector<2x32xf32> to vector<2x32xbf16>
    %cst_21 = arith.constant dense<0.000000e+00> : vector<2x32xf32>
    %41 = tpu.matmul %40, %6, %cst_21 {dimension_numbers = #tpu.dot_dimension_numbers<[1], [0], [0], [1], [0, 0, 1, 1], [], []>} : vector<2x32xbf16>, vector<32x32xbf16>, vector<2x32xf32> -> vector<2x32xf32>
    %42 = arith.addf %39, %41 : vector<2x32xf32>
    %43 = math.tanh %42 : vector<2x32xf32>
    %c10 = arith.constant 10 : index
    %c0_22 = arith.constant 0 : index
    %44 = vector.load %arg11[%c10, %c0_22] : memref<16x32xf32, #tpu.memory_space<vmem>>, vector<2x32xf32>
    tpu.vector_store %arg11[%c10, %c0_22], %43 {strides = array<i32>} : memref<16x32xf32, #tpu.memory_space<vmem>>, vector<2x32xf32>,
    %45 = vector.extract_strided_slice %5 {offsets = [12, 0], sizes = [2, 32], strides = [1, 1]} : vector<16x32xf32> to vector<2x32xf32>
    %46 = arith.truncf %43 : vector<2x32xf32> to vector<2x32xbf16>
    %cst_23 = arith.constant dense<0.000000e+00> : vector<2x32xf32>
    %47 = tpu.matmul %46, %6, %cst_23 {dimension_numbers = #tpu.dot_dimension_numbers<[1], [0], [0], [1], [0, 0, 1, 1], [], []>} : vector<2x32xbf16>, vector<32x32xbf16>, vector<2x32xf32> -> vector<2x32xf32>
    %48 = arith.addf %45, %47 : vector<2x32xf32>
    %49 = math.tanh %48 : vector<2x32xf32>
    %c12 = arith.constant 12 : index
    %c0_24 = arith.constant 0 : index
    %50 = vector.load %arg11[%c12, %c0_24] : memref<16x32xf32, #tpu.memory_space<vmem>>, vector<2x32xf32>
    tpu.vector_store %arg11[%c12, %c0_24], %49 {strides = array<i32>} : memref<16x32xf32, #tpu.memory_space<vmem>>, vector<2x32xf32>,
    %51 = vector.extract_strided_slice %5 {offsets = [14, 0], sizes = [2, 32], strides = [1, 1]} : vector<16x32xf32> to vector<2x32xf32>
    %52 = arith.truncf %49 : vector<2x32xf32> to vector<2x32xbf16>
    %cst_25 = arith.constant dense<0.000000e+00> : vector<2x32xf32>
    %53 = tpu.matmul %52, %6, %cst_25 {dimension_numbers = #tpu.dot_dimension_numbers<[1], [0], [0], [1], [0, 0, 1, 1], [], []>} : vector<2x32xbf16>, vector<32x32xbf16>, vector<2x32xf32> -> vector<2x32xf32>
    %54 = arith.addf %51, %53 : vector<2x32xf32>
    %55 = math.tanh %54 : vector<2x32xf32>
    %c14 = arith.constant 14 : index
    %c0_26 = arith.constant 0 : index
    %56 = vector.load %arg11[%c14, %c0_26] : memref<16x32xf32, #tpu.memory_space<vmem>>, vector<2x32xf32>
    tpu.vector_store %arg11[%c14, %c0_26], %55 {strides = array<i32>} : memref<16x32xf32, #tpu.memory_space<vmem>>, vector<2x32xf32>,
    %c0_27 = arith.constant 0 : index
    %c0_28 = arith.constant 0 : index
    %57 = vector.load %arg11[%c0_27, %c0_28] : memref<16x32xf32, #tpu.memory_space<vmem>>, vector<16x32xf32>
    %58 = arith.truncf %57 : vector<16x32xf32> to vector<16x32xbf16>
    %c0_29 = arith.constant 0 : index
    %c0_30 = arith.constant 0 : index
    %59 = vector.load %arg5[%c0_29, %c0_30] : memref<32x32xbf16, #tpu.memory_space<vmem>>, vector<32x32xbf16>
    %cst_31 = arith.constant dense<0.000000e+00> : vector<16x32xf32>
    %60 = tpu.matmul %58, %59, %cst_31 {dimension_numbers = #tpu.dot_dimension_numbers<[1], [0], [0], [1], [0, 0, 1, 1], [], []>} : vector<16x32xbf16>, vector<32x32xbf16>, vector<16x32xf32> -> vector<16x32xf32>
    %c0_32 = arith.constant 0 : index
    %c0_33 = arith.constant 0 : index
    %61 = vector.load %arg7[%c0_32, %c0_33] : memref<1x32xf32, #tpu.memory_space<vmem>>, vector<1x32xf32>
    %62 = vector.broadcast %61 : vector<1x32xf32> to vector<16x32xf32>
    %63 = arith.addf %60, %62 : vector<16x32xf32>
    %c0_34 = arith.constant 0 : index
    %c0_35 = arith.constant 0 : index
    %64 = vector.load %arg6[%c0_34, %c0_35] : memref<32x32xbf16, #tpu.memory_space<vmem>>, vector<32x32xbf16>
    %c1 = arith.constant 1 : index
    %c0_36 = arith.constant 0 : index
    %c0_37 = arith.constant 0 : index
    %65 = vector.load %arg1[%c1, %c0_36, %c0_37] : memref<2x2x32xf32, #tpu.memory_space<vmem>>, vector<1x2x32xf32>
    %66 = vector.shape_cast %65 : vector<1x2x32xf32> to vector<2x32xf32>
    %67 = vector.extract_strided_slice %63 {offsets = [0, 0], sizes = [2, 32], strides = [1, 1]} : vector<16x32xf32> to vector<2x32xf32>
    %68 = arith.truncf %66 : vector<2x32xf32> to vector<2x32xbf16>
    %cst_38 = arith.constant dense<0.000000e+00> : vector<2x32xf32>
    %69 = tpu.matmul %68, %64, %cst_38 {dimension_numbers = #tpu.dot_dimension_numbers<[1], [0], [0], [1], [0, 0, 1, 1], [], []>} : vector<2x32xbf16>, vector<32x32xbf16>, vector<2x32xf32> -> vector<2x32xf32>
    %70 = arith.addf %67, %69 : vector<2x32xf32>
    %71 = math.tanh %70 : vector<2x32xf32>
    %72 = vector.extract_strided_slice %63 {offsets = [2, 0], sizes = [2, 32], strides = [1, 1]} : vector<16x32xf32> to vector<2x32xf32>
    %73 = arith.truncf %71 : vector<2x32xf32> to vector<2x32xbf16>
    %cst_39 = arith.constant dense<0.000000e+00> : vector<2x32xf32>
    %74 = tpu.matmul %73, %64, %cst_39 {dimension_numbers = #tpu.dot_dimension_numbers<[1], [0], [0], [1], [0, 0, 1, 1], [], []>} : vector<2x32xbf16>, vector<32x32xbf16>, vector<2x32xf32> -> vector<2x32xf32>
    %75 = arith.addf %72, %74 : vector<2x32xf32>
    %76 = math.tanh %75 : vector<2x32xf32>
    %77 = vector.extract_strided_slice %63 {offsets = [4, 0], sizes = [2, 32], strides = [1, 1]} : vector<16x32xf32> to vector<2x32xf32>
    %78 = arith.truncf %76 : vector<2x32xf32> to vector<2x32xbf16>
    %cst_40 = arith.constant dense<0.000000e+00> : vector<2x32xf32>
    %79 = tpu.matmul %78, %64, %cst_40 {dimension_numbers = #tpu.dot_dimension_numbers<[1], [0], [0], [1], [0, 0, 1, 1], [], []>} : vector<2x32xbf16>, vector<32x32xbf16>, vector<2x32xf32> -> vector<2x32xf32>
    %80 = arith.addf %77, %79 : vector<2x32xf32>
    %81 = math.tanh %80 : vector<2x32xf32>
    %82 = vector.extract_strided_slice %63 {offsets = [6, 0], sizes = [2, 32], strides = [1, 1]} : vector<16x32xf32> to vector<2x32xf32>
    %83 = arith.truncf %81 : vector<2x32xf32> to vector<2x32xbf16>
    %cst_41 = arith.constant dense<0.000000e+00> : vector<2x32xf32>
    %84 = tpu.matmul %83, %64, %cst_41 {dimension_numbers = #tpu.dot_dimension_numbers<[1], [0], [0], [1], [0, 0, 1, 1], [], []>} : vector<2x32xbf16>, vector<32x32xbf16>, vector<2x32xf32> -> vector<2x32xf32>
    %85 = arith.addf %82, %84 : vector<2x32xf32>
    %86 = math.tanh %85 : vector<2x32xf32>
    %87 = vector.extract_strided_slice %63 {offsets = [8, 0], sizes = [2, 32], strides = [1, 1]} : vector<16x32xf32> to vector<2x32xf32>
    %88 = arith.truncf %86 : vector<2x32xf32> to vector<2x32xbf16>
    %cst_42 = arith.constant dense<0.000000e+00> : vector<2x32xf32>
    %89 = tpu.matmul %88, %64, %cst_42 {dimension_numbers = #tpu.dot_dimension_numbers<[1], [0], [0], [1], [0, 0, 1, 1], [], []>} : vector<2x32xbf16>, vector<32x32xbf16>, vector<2x32xf32> -> vector<2x32xf32>
    %90 = arith.addf %87, %89 : vector<2x32xf32>
    %91 = math.tanh %90 : vector<2x32xf32>
    %92 = vector.extract_strided_slice %63 {offsets = [10, 0], sizes = [2, 32], strides = [1, 1]} : vector<16x32xf32> to vector<2x32xf32>
    %93 = arith.truncf %91 : vector<2x32xf32> to vector<2x32xbf16>
    %cst_43 = arith.constant dense<0.000000e+00> : vector<2x32xf32>
    %94 = tpu.matmul %93, %64, %cst_43 {dimension_numbers = #tpu.dot_dimension_numbers<[1], [0], [0], [1], [0, 0, 1, 1], [], []>} : vector<2x32xbf16>, vector<32x32xbf16>, vector<2x32xf32> -> vector<2x32xf32>
    %95 = arith.addf %92, %94 : vector<2x32xf32>
    %96 = math.tanh %95 : vector<2x32xf32>
    %97 = vector.extract_strided_slice %63 {offsets = [12, 0], sizes = [2, 32], strides = [1, 1]} : vector<16x32xf32> to vector<2x32xf32>
    %98 = arith.truncf %96 : vector<2x32xf32> to vector<2x32xbf16>
    %cst_44 = arith.constant dense<0.000000e+00> : vector<2x32xf32>
    %99 = tpu.matmul %98, %64, %cst_44 {dimension_numbers = #tpu.dot_dimension_numbers<[1], [0], [0], [1], [0, 0, 1, 1], [], []>} : vector<2x32xbf16>, vector<32x32xbf16>, vector<2x32xf32> -> vector<2x32xf32>
    %100 = arith.addf %97, %99 : vector<2x32xf32>
    %101 = math.tanh %100 : vector<2x32xf32>
    %102 = vector.extract_strided_slice %63 {offsets = [14, 0], sizes = [2, 32], strides = [1, 1]} : vector<16x32xf32> to vector<2x32xf32>
    %103 = arith.truncf %101 : vector<2x32xf32> to vector<2x32xbf16>
    %cst_45 = arith.constant dense<0.000000e+00> : vector<2x32xf32>
    %104 = tpu.matmul %103, %64, %cst_45 {dimension_numbers = #tpu.dot_dimension_numbers<[1], [0], [0], [1], [0, 0, 1, 1], [], []>} : vector<2x32xbf16>, vector<32x32xbf16>, vector<2x32xf32> -> vector<2x32xf32>
    %105 = arith.addf %102, %104 : vector<2x32xf32>
    %106 = math.tanh %105 : vector<2x32xf32>
    %107 = arith.truncf %106 : vector<2x32xf32> to vector<2x32xbf16>
    %c0_46 = arith.constant 0 : index
    %c0_47 = arith.constant 0 : index
    %108 = vector.load %arg8[%c0_46, %c0_47] : memref<32x128xbf16, #tpu.memory_space<vmem>>, vector<32x128xbf16>
    %cst_48 = arith.constant dense<0.000000e+00> : vector<2x128xf32>
    %109 = tpu.matmul %107, %108, %cst_48 {dimension_numbers = #tpu.dot_dimension_numbers<[1], [0], [0], [1], [0, 0, 1, 1], [], []>} : vector<2x32xbf16>, vector<32x128xbf16>, vector<2x128xf32> -> vector<2x128xf32>
    %c0_49 = arith.constant 0 : index
    %c0_50 = arith.constant 0 : index
    %110 = vector.load %arg9[%c0_49, %c0_50] : memref<1x128xf32, #tpu.memory_space<vmem>>, vector<1x128xf32>
    %111 = vector.broadcast %110 : vector<1x128xf32> to vector<2x128xf32>
    %112 = arith.addf %109, %111 : vector<2x128xf32>
    %c0_51 = arith.constant 0 : index
    %c0_52 = arith.constant 0 : index
    %113 = vector.load %arg10[%c0_51, %c0_52] : memref<2x128xf32, #tpu.memory_space<vmem>>, vector<2x128xf32>
    tpu.vector_store %arg10[%c0_51, %c0_52], %112 {strides = array<i32>} : memref<2x128xf32, #tpu.memory_space<vmem>>, vector<2x128xf32>,
    return
  }
}

</mosaic_0001>

<llo_original>
// kernel: simple_rnn_forward.1
$region0: #{simple_rnn_forward.1}
  #allocation0 [shape = 'u32[]', space=smem, size = 0x4, offset = 0x4, fixed_abs, tag = 'smem constant byte address 0x4 - core index']
  #allocation1 [shape = 'u32[144,128]{1,0:T(1,128)}', space=vmem, size = 0x12000, scoped, tag = 'internal scratch']
  #allocation2 [shape = 'f32[16,32]{1,0:T(8,128)}', space=vmem, size = 0x2000, scoped, tag = 'scratch operand']
  %s0 = inlined_call_operand.vmem [shape: bf16[16,16], index: 0, kind: input, shape index: {}]
  %s1 = inlined_call_operand.vmem [shape: f32[2,2,32], index: 1, kind: input, shape index: {}]
  %s2 = inlined_call_operand.hbm [shape: bf16[16,32], index: 2, kind: input, shape index: {}]
  %s3 = inlined_call_operand.vmem [shape: bf16[32,32], index: 3, kind: input, shape index: {}]
  %s4 = inlined_call_operand.vmem [shape: f32[1,32], index: 4, kind: input, shape index: {}]
  %s5 = inlined_call_operand.vmem [shape: bf16[32,32], index: 5, kind: input, shape index: {}]
  %s6 = inlined_call_operand.vmem [shape: bf16[32,32], index: 6, kind: input, shape index: {}]
  %s7 = inlined_call_operand.vmem [shape: f32[1,32], index: 7, kind: input, shape index: {}]
  %s8 = inlined_call_operand.hbm [shape: bf16[32,128], index: 8, kind: input, shape index: {}]
  %s9 = inlined_call_operand.hbm [shape: f32[1,128], index: 9, kind: input, shape index: {}]
  %s10 = inlined_call_operand.hbm [shape: f32[2,128], index: 10, kind: output, shape index: {}]
  %s11 = sld [smem:[#allocation0]]
  $region62: #{simple_rnn_forward.1} parent=0
    _
  %s13 = ssub.s32 1, %s11
  %s14 = scalar_select 0, %s13, %s11
  $region1: #{simple_rnn_forward.1} parent=0
    #allocation3 [shape = 'u8[4096]{0}', space=vmem, size = 0x1000, scoped, tag = 'input window, operand 2, single buffered']
    #allocation4 [shape = 's32[1]{0}', space=sflag, size = 0x4, scoped, tag = 'scoped memory for simple_rnn_forward.1']
    #allocation5 [shape = 's32[1]{0}', space=sflag, size = 0x4, scoped, tag = 'scoped memory for simple_rnn_forward.1']
    #allocation6 [shape = 'u8[8192]{0}', space=vmem, size = 0x2000, scoped, tag = 'input window, operand 8, single buffered']
    #allocation7 [shape = 's32[1]{0}', space=sflag, size = 0x4, scoped, tag = 'scoped memory for simple_rnn_forward.1']
    #allocation8 [shape = 'u8[512]{0}', space=vmem, size = 0x400, scoped, tag = 'input window, operand 9, single buffered']
    #allocation9 [shape = 'u8[1024]{0}', space=vmem, size = 0x400, scoped, tag = 'output window, operand 0, single buffered']
    %15 = vsyncpa [#allocation4], 0
    %16 = vsyncpa [#allocation7], 0
    %17 = vsyncpa [#allocation5], 0
    // Predicated region
    $region2: #{simple_rnn_forward.1} parent=1 // pred_check
      _
    $region3: #{simple_rnn_forward.1} parent=1 // pred_check_branch
      %19 = sbr.rel (0) target = $region5
    $region4: #{simple_rnn_forward.1} parent=1 // pred_region
      _
    $region5: #{simple_rnn_forward.1} parent=1 // pred_fallthru
      _
    // Predicated region
    $region6: #{simple_rnn_forward.1} parent=1 // pred_check
      _
    $region7: #{simple_rnn_forward.1} parent=1 // pred_check_branch
      %21 = sbr.rel (0) target = $region9
    $region8: #{simple_rnn_forward.1} parent=1 // pred_region
      _
    $region9: #{simple_rnn_forward.1} parent=1 // pred_fallthru
      _
    // Predicated region
    $region10: #{simple_rnn_forward.1} parent=1 // pred_check
      _
    $region11: #{simple_rnn_forward.1} parent=1 // pred_check_branch
      %23 = sbr.rel (0) target = $region13
    $region12: #{simple_rnn_forward.1} parent=1 // pred_region
      %s25 = ssub.s32 128, 128
      %26 = vsyncadd [#allocation4], %s25
      %s27 = sshll.u32 [#allocation3], 4
      %s28 = int_to_ptr.vmem [resolvable:$true] %s27
      %33 = dma.hbm_to_vmem [thread:$0]  %s2, 128, %s28, [#allocation4], 64, 64, 4
    $region13: #{simple_rnn_forward.1} parent=1 // pred_fallthru
      _
    // Predicated region
    $region14: #{simple_rnn_forward.1} parent=1 // pred_check
      _
    $region15: #{simple_rnn_forward.1} parent=1 // pred_check_branch
      %35 = sbr.rel (0) target = $region17
    $region16: #{simple_rnn_forward.1} parent=1 // pred_region
      _
    $region17: #{simple_rnn_forward.1} parent=1 // pred_fallthru
      _
    // Predicated region
    $region18: #{simple_rnn_forward.1} parent=1 // pred_check
      _
    $region19: #{simple_rnn_forward.1} parent=1 // pred_check_branch
      %37 = sbr.rel (0) target = $region21
    $region20: #{simple_rnn_forward.1} parent=1 // pred_region
      _
    $region21: #{simple_rnn_forward.1} parent=1 // pred_fallthru
      _
    // Predicated region
    $region22: #{simple_rnn_forward.1} parent=1 // pred_check
      _
    $region23: #{simple_rnn_forward.1} parent=1 // pred_check_branch
      %39 = sbr.rel (0) target = $region25
    $region24: #{simple_rnn_forward.1} parent=1 // pred_region
      _
    $region25: #{simple_rnn_forward.1} parent=1 // pred_fallthru
      _
    // Predicated region
    $region26: #{simple_rnn_forward.1} parent=1 // pred_check
      _
    $region27: #{simple_rnn_forward.1} parent=1 // pred_check_branch
      %41 = sbr.rel (0) target = $region29
    $region28: #{simple_rnn_forward.1} parent=1 // pred_region
      _
    $region29: #{simple_rnn_forward.1} parent=1 // pred_fallthru
      _
    // Predicated region
    $region30: #{simple_rnn_forward.1} parent=1 // pred_check
      _
    $region31: #{simple_rnn_forward.1} parent=1 // pred_check_branch
      %43 = sbr.rel (0) target = $region33
    $region32: #{simple_rnn_forward.1} parent=1 // pred_region
      _
    $region33: #{simple_rnn_forward.1} parent=1 // pred_fallthru
      _
    // Predicated region
    $region34: #{simple_rnn_forward.1} parent=1 // pred_check
      _
    $region35: #{simple_rnn_forward.1} parent=1 // pred_check_branch
      %45 = sbr.rel (0) target = $region37
    $region36: #{simple_rnn_forward.1} parent=1 // pred_region
      %s47 = ssub.s32 256, 256
      %48 = vsyncadd [#allocation7], %s47
      %s49 = sshll.u32 [#allocation6], 4
      %s50 = int_to_ptr.vmem [resolvable:$true] %s49
      %55 = dma.hbm_to_vmem [thread:$0]  %s8, 256, %s50, [#allocation7], 64, 64, 4
    $region37: #{simple_rnn_forward.1} parent=1 // pred_fallthru
      _
    // Predicated region
    $region38: #{simple_rnn_forward.1} parent=1 // pred_check
      _
    $region39: #{simple_rnn_forward.1} parent=1 // pred_check_branch
      %57 = sbr.rel (0) target = $region41
    $region40: #{simple_rnn_forward.1} parent=1 // pred_region
      %s59 = ssub.s32 16, 16
      %60 = vsyncadd [#allocation7], %s59
      %s62 = sshll.u32 [#allocation8], 4
      %s63 = int_to_ptr.vmem [resolvable:$true] %s62
      %65 = dma.hbm_to_vmem [thread:$0]  %s9, 16, %s63, [#allocation7]
    $region41: #{simple_rnn_forward.1} parent=1 // pred_fallthru
      _
    // Predicated region
    $region42: #{simple_rnn_forward.1} parent=1 // pred_check
      _
    $region43: #{simple_rnn_forward.1} parent=1 // pred_check_branch
      %67 = sbr.rel (0) target = $region45
    $region44: #{simple_rnn_forward.1} parent=1 // pred_region
      %68 = dma.done [#allocation4], 128
    $region45: #{simple_rnn_forward.1} parent=1 // pred_fallthru
      _
    // Predicated region
    $region46: #{simple_rnn_forward.1} parent=1 // pred_check
      _
    $region47: #{simple_rnn_forward.1} parent=1 // pred_check_branch
      %70 = sbr.rel (0) target = $region49
    $region48: #{simple_rnn_forward.1} parent=1 // pred_region
      %71 = dma.done [#allocation7], 256
    $region49: #{simple_rnn_forward.1} parent=1 // pred_fallthru
      _
    // Predicated region
    $region50: #{simple_rnn_forward.1} parent=1 // pred_check
      _
    $region51: #{simple_rnn_forward.1} parent=1 // pred_check_branch
      %73 = sbr.rel (0) target = $region53
    $region52: #{simple_rnn_forward.1} parent=1 // pred_region
      %74 = dma.done [#allocation7], 16
    $region53: #{simple_rnn_forward.1} parent=1 // pred_fallthru
      _
    %v76 = vld [vmem:[%s0] sm:$0xf]
    %v77 = vld [vmem:[%s0 + $0x4] sm:$0xf]
    %v78 = vld [vmem:[#allocation3] sm:$0xf]
    %v79 = vld [vmem:[#allocation3 + $0x4] sm:$0xf]
    %v80 = vld [vmem:[%s4] sm:$0x1]
    %v82 = vlaneseq
    %v83 = vshrl.u32 %v82, 7
    %v84 = vsub.s32 0, %v83
    %v85 = vrot.slane %v80, %v84
    %v89 = vunpack.c.l.b16 %v76
    %v90 = vunpack.c.l.b16 %v77
    %v91 = vpack.c.b16 %v90, %v89
    %v94 = vunpack.c.l.b16 %v78
    %v95 = vunpack.c.l.b16 %v79
    %v96 = vpack.c.b16 %v95, %v94
    %vm98 = vcmask 130048
    %v100 = vsel %vm98, %v91, 0
    %102 = vmatprep.subr.bf16.mxu0 0
    %103 = vmatpush1.bf16.msra.mxu0 0
    %104 = vmatprep.subr.bf16.mxu0 0
    %105 = vmatpush1.bf16.msra.mxu0 0
    %106 = vmatprep.subr.bf16.mxu0 0
    %107 = vmatpush1.bf16.msra.mxu0 0
    %108 = vmatprep.subr.bf16.mxu0 0
    %109 = vmatpush1.bf16.msra.mxu0 0
    %110 = vmatprep.subr.bf16.mxu0 0
    %111 = vmatpush1.bf16.msra.mxu0 0
    %112 = vmatprep.subr.bf16.mxu0 0
    %113 = vmatpush1.bf16.msra.mxu0 0
    %114 = vmatprep.subr.bf16.mxu0 0
    %115 = vmatpush1.bf16.msra.mxu0 0
    %116 = vmatprep.subr.bf16.mxu0 0
    %117 = vmatpush1.bf16.msra.mxu0 %v96
    %118 = vmatprep.subr.bf16.mxu0 0
    %119 = vmatpush2.bf16.msra.mxu0 0
    %120 = vmatprep.subr.bf16.mxu0 0
    %121 = vmatpush2.bf16.msra.mxu0 0
    %122 = vmatprep.subr.bf16.mxu0 0
    %123 = vmatpush2.bf16.msra.mxu0 0
    %124 = vmatprep.subr.bf16.mxu0 0
    %125 = vmatpush2.bf16.msra.mxu0 0
    %126 = vmatprep.subr.bf16.mxu0 0
    %127 = vmatpush2.bf16.msra.mxu0 0
    %128 = vmatprep.subr.bf16.mxu0 0
    %129 = vmatpush2.bf16.msra.mxu0 0
    %130 = vmatprep.subr.bf16.mxu0 0
    %131 = vmatpush2.bf16.msra.mxu0 0
    %132 = vmatprep.subr.bf16.mxu0 0
    %133 = vmatpush2.bf16.msra.mxu0 0
    %134 = vmatprep.mubr.bf16.mxu0 0
    %135 = vmatmul.mubr.bf16.gmra.mxu0 %v100
    %v136 = vpop.f32.mrf.mxu0
    %v137 = vadd.f32 %v85, %v136
    %v138 = vpop.f32.mrf.mxu0
    %v139 = vpop.f32.mrf.mxu0
    %v140 = vadd.f32 %v85, %v139
    %v141 = vpop.f32.mrf.mxu0
    %142 = vdwg.mxu0
    %v143 = vld [vmem:[%s3] sm:$0xf]
    %v144 = vld [vmem:[%s3 + $0x4] sm:$0xf]
    %v145 = vld [vmem:[%s3 + $0x8] sm:$0xf]
    %v146 = vld [vmem:[%s3 + $0xc] sm:$0xf]
    %v147 = vld [vmem:[%s1] sm:$0x3]
    %v148 = vpack.c.bf16 %v147, %v147
    %v153 = vunpack.c.l.b16 %v143
    %v154 = vunpack.c.l.b16 %v144
    %v155 = vunpack.c.l.b16 %v145
    %v156 = vunpack.c.l.b16 %v146
    %v157 = vpack.c.b16 %v154, %v153
    %v158 = vpack.c.b16 %v156, %v155
    %vm161 = vcmask 261120
    %v163 = vsel %vm161, %v148, 0
    %165 = vmatprep.subr.bf16.mxu0 0
    %166 = vmatpush1.bf16.msra.mxu0 0
    %167 = vmatprep.subr.bf16.mxu0 0
    %168 = vmatpush1.bf16.msra.mxu0 0
    %169 = vmatprep.subr.bf16.mxu0 0
    %170 = vmatpush1.bf16.msra.mxu0 0
    %171 = vmatprep.subr.bf16.mxu0 0
    %172 = vmatpush1.bf16.msra.mxu0 0
    %173 = vmatprep.subr.bf16.mxu0 0
    %174 = vmatpush1.bf16.msra.mxu0 0
    %175 = vmatprep.subr.bf16.mxu0 0
    %176 = vmatpush1.bf16.msra.mxu0 0
    %177 = vmatprep.subr.bf16.mxu0 0
    %178 = vmatpush1.bf16.msra.mxu0 %v158
    %179 = vmatprep.subr.bf16.mxu0 0
    %180 = vmatpush1.bf16.msra.mxu0 %v157
    %181 = vmatprep.subr.bf16.mxu0 0
    %182 = vmatpush2.bf16.msra.mxu0 0
    %183 = vmatprep.subr.bf16.mxu0 0
    %184 = vmatpush2.bf16.msra.mxu0 0
    %185 = vmatprep.subr.bf16.mxu0 0
    %186 = vmatpush2.bf16.msra.mxu0 0
    %187 = vmatprep.subr.bf16.mxu0 0
    %188 = vmatpush2.bf16.msra.mxu0 0
    %189 = vmatprep.subr.bf16.mxu0 0
    %190 = vmatpush2.bf16.msra.mxu0 0
    %191 = vmatprep.subr.bf16.mxu0 0
    %192 = vmatpush2.bf16.msra.mxu0 0
    %193 = vmatprep.subr.bf16.mxu0 0
    %194 = vmatpush2.bf16.msra.mxu0 0
    %195 = vmatprep.subr.bf16.mxu0 0
    %196 = vmatpush2.bf16.msra.mxu0 0
    %197 = vmatprep.mubr.bf16.mxu0 0
    %198 = vmatmul.mubr.bf16.gmra.mxu0 %v163
    %v199 = vpop.f32.mrf.mxu0
    %v200 = vadd.f32 0.0, %v199
    %v201 = vpop.f32.mrf.mxu0
    %v202 = vpop.f32.mrf.mxu0
    %v203 = vpop.f32.mrf.mxu0
    %204 = vdwg.mxu0
    %v205 = vadd.f32 %v137, %v200
    %v206 = vtanh.pop %v205
    %vm207 = vcmask 254976
    %208 = vst.msk [vmem:[#allocation2] sm:$0x3] %vm207, %v206
    %v209 = vpack.c.bf16 %v206, %v206
    %v211 = vsel %vm161, %v209, 0
    %213 = vmatprep.subr.bf16.mxu0 0
    %214 = vmatpush1.bf16.msra.mxu0 0
    %215 = vmatprep.subr.bf16.mxu0 0
    %216 = vmatpush1.bf16.msra.mxu0 0
    %217 = vmatprep.subr.bf16.mxu0 0
    %218 = vmatpush1.bf16.msra.mxu0 0
    %219 = vmatprep.subr.bf16.mxu0 0
    %220 = vmatpush1.bf16.msra.mxu0 0
    %221 = vmatprep.subr.bf16.mxu0 0
    %222 = vmatpush1.bf16.msra.mxu0 0
    %223 = vmatprep.subr.bf16.mxu0 0
    %224 = vmatpush1.bf16.msra.mxu0 0
    %225 = vmatprep.subr.bf16.mxu0 0
    %226 = vmatpush1.bf16.msra.mxu0 %v158
    %227 = vmatprep.subr.bf16.mxu0 0
    %228 = vmatpush1.bf16.msra.mxu0 %v157
    %229 = vmatprep.subr.bf16.mxu0 0
    %230 = vmatpush2.bf16.msra.mxu0 0
    %231 = vmatprep.subr.bf16.mxu0 0
    %232 = vmatpush2.bf16.msra.mxu0 0
    %233 = vmatprep.subr.bf16.mxu0 0
    %234 = vmatpush2.bf16.msra.mxu0 0
    %235 = vmatprep.subr.bf16.mxu0 0
    %236 = vmatpush2.bf16.msra.mxu0 0
    %237 = vmatprep.subr.bf16.mxu0 0
    %238 = vmatpush2.bf16.msra.mxu0 0
    %239 = vmatprep.subr.bf16.mxu0 0
    %240 = vmatpush2.bf16.msra.mxu0 0
    %241 = vmatprep.subr.bf16.mxu0 0
    %242 = vmatpush2.bf16.msra.mxu0 0
    %243 = vmatprep.subr.bf16.mxu0 0
    %244 = vmatpush2.bf16.msra.mxu0 0
    %245 = vmatprep.mubr.bf16.mxu0 0
    %246 = vmatmul.mubr.bf16.gmra.mxu0 %v211
    %v247 = vpop.f32.mrf.mxu0
    %v248 = vadd.f32 0.0, %v247
    %v249 = vpop.f32.mrf.mxu0
    %v250 = vpop.f32.mrf.mxu0
    %v251 = vpop.f32.mrf.mxu0
    %252 = vdwg.mxu0
    %v254 = vrot.slane %v248, 6
    %v256 = vadd.f32 %v137, %v254
    %v257 = vtanh.pop %v256
    %vm258 = vcmask 257026
    %259 = vst.msk [vmem:[#allocation2] sm:$0xc] %vm258, %v257
    %v260 = vpack.c.bf16 %v257, %v257
    %v262 = vrot.slane %v260, 1
    %v264 = vsel %vm161, %v262, 0
    %266 = vmatprep.subr.bf16.mxu0 0
    %267 = vmatpush1.bf16.msra.mxu0 0
    %268 = vmatprep.subr.bf16.mxu0 0
    %269 = vmatpush1.bf16.msra.mxu0 0
    %270 = vmatprep.subr.bf16.mxu0 0
    %271 = vmatpush1.bf16.msra.mxu0 0
    %272 = vmatprep.subr.bf16.mxu0 0
    %273 = vmatpush1.bf16.msra.mxu0 0
    %274 = vmatprep.subr.bf16.mxu0 0
    %275 = vmatpush1.bf16.msra.mxu0 0
    %276 = vmatprep.subr.bf16.mxu0 0
    %277 = vmatpush1.bf16.msra.mxu0 0
    %278 = vmatprep.subr.bf16.mxu0 0
    %279 = vmatpush1.bf16.msra.mxu0 %v158
    %280 = vmatprep.subr.bf16.mxu0 0
    %281 = vmatpush1.bf16.msra.mxu0 %v157
    %282 = vmatprep.subr.bf16.mxu0 0
    %283 = vmatpush2.bf16.msra.mxu0 0
    %284 = vmatprep.subr.bf16.mxu0 0
    %285 = vmatpush2.bf16.msra.mxu0 0
    %286 = vmatprep.subr.bf16.mxu0 0
    %287 = vmatpush2.bf16.msra.mxu0 0
    %288 = vmatprep.subr.bf16.mxu0 0
    %289 = vmatpush2.bf16.msra.mxu0 0
    %290 = vmatprep.subr.bf16.mxu0 0
    %291 = vmatpush2.bf16.msra.mxu0 0
    %292 = vmatprep.subr.bf16.mxu0 0
    %293 = vmatpush2.bf16.msra.mxu0 0
    %294 = vmatprep.subr.bf16.mxu0 0
    %295 = vmatpush2.bf16.msra.mxu0 0
    %296 = vmatprep.subr.bf16.mxu0 0
    %297 = vmatpush2.bf16.msra.mxu0 0
    %298 = vmatprep.mubr.bf16.mxu0 0
    %299 = vmatmul.mubr.bf16.gmra.mxu0 %v264
    %v300 = vpop.f32.mrf.mxu0
    %v301 = vadd.f32 0.0, %v300
    %v302 = vpop.f32.mrf.mxu0
    %v303 = vpop.f32.mrf.mxu0
    %v304 = vpop.f32.mrf.mxu0
    %305 = vdwg.mxu0
    %v307 = vrot.slane %v301, 4
    %v309 = vadd.f32 %v137, %v307
    %v310 = vtanh.pop %v309
    %vm311 = vcmask 259076
    %312 = vst.msk [vmem:[#allocation2] sm:$0x30] %vm311, %v310
    %v313 = vpack.c.bf16 %v310, %v310
    %v315 = vrot.slane %v313, 2
    %v317 = vsel %vm161, %v315, 0
    %319 = vmatprep.subr.bf16.mxu0 0
    %320 = vmatpush1.bf16.msra.mxu0 0
    %321 = vmatprep.subr.bf16.mxu0 0
    %322 = vmatpush1.bf16.msra.mxu0 0
    %323 = vmatprep.subr.bf16.mxu0 0
    %324 = vmatpush1.bf16.msra.mxu0 0
    %325 = vmatprep.subr.bf16.mxu0 0
    %326 = vmatpush1.bf16.msra.mxu0 0
    %327 = vmatprep.subr.bf16.mxu0 0
    %328 = vmatpush1.bf16.msra.mxu0 0
    %329 = vmatprep.subr.bf16.mxu0 0
    %330 = vmatpush1.bf16.msra.mxu0 0
    %331 = vmatprep.subr.bf16.mxu0 0
    %332 = vmatpush1.bf16.msra.mxu0 %v158
    %333 = vmatprep.subr.bf16.mxu0 0
    %334 = vmatpush1.bf16.msra.mxu0 %v157
    %335 = vmatprep.subr.bf16.mxu0 0
    %336 = vmatpush2.bf16.msra.mxu0 0
    %337 = vmatprep.subr.bf16.mxu0 0
    %338 = vmatpush2.bf16.msra.mxu0 0
    %339 = vmatprep.subr.bf16.mxu0 0
    %340 = vmatpush2.bf16.msra.mxu0 0
    %341 = vmatprep.subr.bf16.mxu0 0
    %342 = vmatpush2.bf16.msra.mxu0 0
    %343 = vmatprep.subr.bf16.mxu0 0
    %344 = vmatpush2.bf16.msra.mxu0 0
    %345 = vmatprep.subr.bf16.mxu0 0
    %346 = vmatpush2.bf16.msra.mxu0 0
    %347 = vmatprep.subr.bf16.mxu0 0
    %348 = vmatpush2.bf16.msra.mxu0 0
    %349 = vmatprep.subr.bf16.mxu0 0
    %350 = vmatpush2.bf16.msra.mxu0 0
    %351 = vmatprep.mubr.bf16.mxu0 0
    %352 = vmatmul.mubr.bf16.gmra.mxu0 %v317
    %v353 = vpop.f32.mrf.mxu0
    %v354 = vadd.f32 0.0, %v353
    %v355 = vpop.f32.mrf.mxu0
    %v356 = vpop.f32.mrf.mxu0
    %v357 = vpop.f32.mrf.mxu0
    %358 = vdwg.mxu0
    %v360 = vrot.slane %v354, 2
    %v362 = vadd.f32 %v137, %v360
    %v363 = vtanh.pop %v362
    %vm364 = vcmask 261126
    %365 = vst.msk [vmem:[#allocation2] sm:$0xc0] %vm364, %v363
    %v366 = vpack.c.bf16 %v363, %v363
    %v368 = vrot.slane %v366, 3
    %v370 = vsel %vm161, %v368, 0
    %372 = vmatprep.subr.bf16.mxu0 0
    %373 = vmatpush1.bf16.msra.mxu0 0
    %374 = vmatprep.subr.bf16.mxu0 0
    %375 = vmatpush1.bf16.msra.mxu0 0
    %376 = vmatprep.subr.bf16.mxu0 0
    %377 = vmatpush1.bf16.msra.mxu0 0
    %378 = vmatprep.subr.bf16.mxu0 0
    %379 = vmatpush1.bf16.msra.mxu0 0
    %380 = vmatprep.subr.bf16.mxu0 0
    %381 = vmatpush1.bf16.msra.mxu0 0
    %382 = vmatprep.subr.bf16.mxu0 0
    %383 = vmatpush1.bf16.msra.mxu0 0
    %384 = vmatprep.subr.bf16.mxu0 0
    %385 = vmatpush1.bf16.msra.mxu0 %v158
    %386 = vmatprep.subr.bf16.mxu0 0
    %387 = vmatpush1.bf16.msra.mxu0 %v157
    %388 = vmatprep.subr.bf16.mxu0 0
    %389 = vmatpush2.bf16.msra.mxu0 0
    %390 = vmatprep.subr.bf16.mxu0 0
    %391 = vmatpush2.bf16.msra.mxu0 0
    %392 = vmatprep.subr.bf16.mxu0 0
    %393 = vmatpush2.bf16.msra.mxu0 0
    %394 = vmatprep.subr.bf16.mxu0 0
    %395 = vmatpush2.bf16.msra.mxu0 0
    %396 = vmatprep.subr.bf16.mxu0 0
    %397 = vmatpush2.bf16.msra.mxu0 0
    %398 = vmatprep.subr.bf16.mxu0 0
    %399 = vmatpush2.bf16.msra.mxu0 0
    %400 = vmatprep.subr.bf16.mxu0 0
    %401 = vmatpush2.bf16.msra.mxu0 0
    %402 = vmatprep.subr.bf16.mxu0 0
    %403 = vmatpush2.bf16.msra.mxu0 0
    %404 = vmatprep.mubr.bf16.mxu0 0
    %405 = vmatmul.mubr.bf16.gmra.mxu0 %v370
    %v406 = vpop.f32.mrf.mxu0
    %v407 = vadd.f32 0.0, %v406
    %v408 = vpop.f32.mrf.mxu0
    %v409 = vpop.f32.mrf.mxu0
    %v410 = vpop.f32.mrf.mxu0
    %411 = vdwg.mxu0
    %v412 = vadd.f32 %v140, %v407
    %v413 = vtanh.pop %v412
    %414 = vst.msk [vmem:[#allocation2 + $0x8] sm:$0x3] %vm207, %v413
    %v415 = vpack.c.bf16 %v413, %v413
    %v417 = vsel %vm161, %v415, 0
    %419 = vmatprep.subr.bf16.mxu0 0
    %420 = vmatpush1.bf16.msra.mxu0 0
    %421 = vmatprep.subr.bf16.mxu0 0
    %422 = vmatpush1.bf16.msra.mxu0 0
    %423 = vmatprep.subr.bf16.mxu0 0
    %424 = vmatpush1.bf16.msra.mxu0 0
    %425 = vmatprep.subr.bf16.mxu0 0
    %426 = vmatpush1.bf16.msra.mxu0 0
    %427 = vmatprep.subr.bf16.mxu0 0
    %428 = vmatpush1.bf16.msra.mxu0 0
    %429 = vmatprep.subr.bf16.mxu0 0
    %430 = vmatpush1.bf16.msra.mxu0 0
    %431 = vmatprep.subr.bf16.mxu0 0
    %432 = vmatpush1.bf16.msra.mxu0 %v158
    %433 = vmatprep.subr.bf16.mxu0 0
    %434 = vmatpush1.bf16.msra.mxu0 %v157
    %435 = vmatprep.subr.bf16.mxu0 0
    %436 = vmatpush2.bf16.msra.mxu0 0
    %437 = vmatprep.subr.bf16.mxu0 0
    %438 = vmatpush2.bf16.msra.mxu0 0
    %439 = vmatprep.subr.bf16.mxu0 0
    %440 = vmatpush2.bf16.msra.mxu0 0
    %441 = vmatprep.subr.bf16.mxu0 0
    %442 = vmatpush2.bf16.msra.mxu0 0
    %443 = vmatprep.subr.bf16.mxu0 0
    %444 = vmatpush2.bf16.msra.mxu0 0
    %445 = vmatprep.subr.bf16.mxu0 0
    %446 = vmatpush2.bf16.msra.mxu0 0
    %447 = vmatprep.subr.bf16.mxu0 0
    %448 = vmatpush2.bf16.msra.mxu0 0
    %449 = vmatprep.subr.bf16.mxu0 0
    %450 = vmatpush2.bf16.msra.mxu0 0
    %451 = vmatprep.mubr.bf16.mxu0 0
    %452 = vmatmul.mubr.bf16.gmra.mxu0 %v417
    %v453 = vpop.f32.mrf.mxu0
    %v454 = vadd.f32 0.0, %v453
    %v455 = vpop.f32.mrf.mxu0
    %v456 = vpop.f32.mrf.mxu0
    %v457 = vpop.f32.mrf.mxu0
    %458 = vdwg.mxu0
    %v460 = vrot.slane %v454, 6
    %v462 = vadd.f32 %v140, %v460
    %v463 = vtanh.pop %v462
    %464 = vst.msk [vmem:[#allocation2 + $0x8] sm:$0xc] %vm258, %v463
    %v465 = vpack.c.bf16 %v463, %v463
    %v467 = vrot.slane %v465, 1
    %v469 = vsel %vm161, %v467, 0
    %471 = vmatprep.subr.bf16.mxu0 0
    %472 = vmatpush1.bf16.msra.mxu0 0
    %473 = vmatprep.subr.bf16.mxu0 0
    %474 = vmatpush1.bf16.msra.mxu0 0
    %475 = vmatprep.subr.bf16.mxu0 0
    %476 = vmatpush1.bf16.msra.mxu0 0
    %477 = vmatprep.subr.bf16.mxu0 0
    %478 = vmatpush1.bf16.msra.mxu0 0
    %479 = vmatprep.subr.bf16.mxu0 0
    %480 = vmatpush1.bf16.msra.mxu0 0
    %481 = vmatprep.subr.bf16.mxu0 0
    %482 = vmatpush1.bf16.msra.mxu0 0
    %483 = vmatprep.subr.bf16.mxu0 0
    %484 = vmatpush1.bf16.msra.mxu0 %v158
    %485 = vmatprep.subr.bf16.mxu0 0
    %486 = vmatpush1.bf16.msra.mxu0 %v157
    %487 = vmatprep.subr.bf16.mxu0 0
    %488 = vmatpush2.bf16.msra.mxu0 0
    %489 = vmatprep.subr.bf16.mxu0 0
    %490 = vmatpush2.bf16.msra.mxu0 0
    %491 = vmatprep.subr.bf16.mxu0 0
    %492 = vmatpush2.bf16.msra.mxu0 0
    %493 = vmatprep.subr.bf16.mxu0 0
    %494 = vmatpush2.bf16.msra.mxu0 0
    %495 = vmatprep.subr.bf16.mxu0 0
    %496 = vmatpush2.bf16.msra.mxu0 0
    %497 = vmatprep.subr.bf16.mxu0 0
    %498 = vmatpush2.bf16.msra.mxu0 0
    %499 = vmatprep.subr.bf16.mxu0 0
    %500 = vmatpush2.bf16.msra.mxu0 0
    %501 = vmatprep.subr.bf16.mxu0 0
    %502 = vmatpush2.bf16.msra.mxu0 0
    %503 = vmatprep.mubr.bf16.mxu0 0
    %504 = vmatmul.mubr.bf16.gmra.mxu0 %v469
    %v505 = vpop.f32.mrf.mxu0
    %v506 = vadd.f32 0.0, %v505
    %v507 = vpop.f32.mrf.mxu0
    %v508 = vpop.f32.mrf.mxu0
    %v509 = vpop.f32.mrf.mxu0
    %510 = vdwg.mxu0
    %v512 = vrot.slane %v506, 4
    %v514 = vadd.f32 %v140, %v512
    %v515 = vtanh.pop %v514
    %516 = vst.msk [vmem:[#allocation2 + $0x8] sm:$0x30] %vm311, %v515
    %v517 = vpack.c.bf16 %v515, %v515
    %v519 = vrot.slane %v517, 2
    %v521 = vsel %vm161, %v519, 0
    %523 = vmatprep.subr.bf16.mxu0 0
    %524 = vmatpush1.bf16.msra.mxu0 0
    %525 = vmatprep.subr.bf16.mxu0 0
    %526 = vmatpush1.bf16.msra.mxu0 0
    %527 = vmatprep.subr.bf16.mxu0 0
    %528 = vmatpush1.bf16.msra.mxu0 0
    %529 = vmatprep.subr.bf16.mxu0 0
    %530 = vmatpush1.bf16.msra.mxu0 0
    %531 = vmatprep.subr.bf16.mxu0 0
    %532 = vmatpush1.bf16.msra.mxu0 0
    %533 = vmatprep.subr.bf16.mxu0 0
    %534 = vmatpush1.bf16.msra.mxu0 0
    %535 = vmatprep.subr.bf16.mxu0 0
    %536 = vmatpush1.bf16.msra.mxu0 %v158
    %537 = vmatprep.subr.bf16.mxu0 0
    %538 = vmatpush1.bf16.msra.mxu0 %v157
    %539 = vmatprep.subr.bf16.mxu0 0
    %540 = vmatpush2.bf16.msra.mxu0 0
    %541 = vmatprep.subr.bf16.mxu0 0
    %542 = vmatpush2.bf16.msra.mxu0 0
    %543 = vmatprep.subr.bf16.mxu0 0
    %544 = vmatpush2.bf16.msra.mxu0 0
    %545 = vmatprep.subr.bf16.mxu0 0
    %546 = vmatpush2.bf16.msra.mxu0 0
    %547 = vmatprep.subr.bf16.mxu0 0
    %548 = vmatpush2.bf16.msra.mxu0 0
    %549 = vmatprep.subr.bf16.mxu0 0
    %550 = vmatpush2.bf16.msra.mxu0 0
    %551 = vmatprep.subr.bf16.mxu0 0
    %552 = vmatpush2.bf16.msra.mxu0 0
    %553 = vmatprep.subr.bf16.mxu0 0
    %554 = vmatpush2.bf16.msra.mxu0 0
    %555 = vmatprep.mubr.bf16.mxu0 0
    %556 = vmatmul.mubr.bf16.gmra.mxu0 %v521
    %v557 = vpop.f32.mrf.mxu0
    %v558 = vadd.f32 0.0, %v557
    %v559 = vpop.f32.mrf.mxu0
    %v560 = vpop.f32.mrf.mxu0
    %v561 = vpop.f32.mrf.mxu0
    %562 = vdwg.mxu0
    %v564 = vrot.slane %v558, 2
    %v566 = vadd.f32 %v140, %v564
    %v567 = vtanh.pop %v566
    %568 = vst.msk [vmem:[#allocation2 + $0x8] sm:$0xc0] %vm364, %v567
    %v569 = vld [vmem:[#allocation2] sm:$0xff]
    %v570 = vld [vmem:[#allocation2 + $0x8] sm:$0xff]
    %v571 = vpack.c.bf16 %v570, %v569
    %v572 = vld [vmem:[%s5] sm:$0xf]
    %v573 = vld [vmem:[%s5 + $0x4] sm:$0xf]
    %v574 = vld [vmem:[%s5 + $0x8] sm:$0xf]
    %v575 = vld [vmem:[%s5 + $0xc] sm:$0xf]
    %v576 = vld [vmem:[%s7] sm:$0x1]
    %v578 = vlaneseq
    %v579 = vshrl.u32 %v578, 7
    %v580 = vsub.s32 0, %v579
    %v581 = vrot.slane %v576, %v580
    %v587 = vunpack.c.l.b16 %v572
    %v588 = vunpack.c.l.b16 %v573
    %v589 = vunpack.c.l.b16 %v574
    %v590 = vunpack.c.l.b16 %v575
    %v591 = vpack.c.b16 %v588, %v587
    %v592 = vpack.c.b16 %v590, %v589
    %v596 = vsel %vm161, %v571, 0
    %598 = vmatprep.subr.bf16.mxu0 0
    %599 = vmatpush1.bf16.msra.mxu0 0
    %600 = vmatprep.subr.bf16.mxu0 0
    %601 = vmatpush1.bf16.msra.mxu0 0
    %602 = vmatprep.subr.bf16.mxu0 0
    %603 = vmatpush1.bf16.msra.mxu0 0
    %604 = vmatprep.subr.bf16.mxu0 0
    %605 = vmatpush1.bf16.msra.mxu0 0
    %606 = vmatprep.subr.bf16.mxu0 0
    %607 = vmatpush1.bf16.msra.mxu0 0
    %608 = vmatprep.subr.bf16.mxu0 0
    %609 = vmatpush1.bf16.msra.mxu0 0
    %610 = vmatprep.subr.bf16.mxu0 0
    %611 = vmatpush1.bf16.msra.mxu0 %v592
    %612 = vmatprep.subr.bf16.mxu0 0
    %613 = vmatpush1.bf16.msra.mxu0 %v591
    %614 = vmatprep.subr.bf16.mxu0 0
    %615 = vmatpush2.bf16.msra.mxu0 0
    %616 = vmatprep.subr.bf16.mxu0 0
    %617 = vmatpush2.bf16.msra.mxu0 0
    %618 = vmatprep.subr.bf16.mxu0 0
    %619 = vmatpush2.bf16.msra.mxu0 0
    %620 = vmatprep.subr.bf16.mxu0 0
    %621 = vmatpush2.bf16.msra.mxu0 0
    %622 = vmatprep.subr.bf16.mxu0 0
    %623 = vmatpush2.bf16.msra.mxu0 0
    %624 = vmatprep.subr.bf16.mxu0 0
    %625 = vmatpush2.bf16.msra.mxu0 0
    %626 = vmatprep.subr.bf16.mxu0 0
    %627 = vmatpush2.bf16.msra.mxu0 0
    %628 = vmatprep.subr.bf16.mxu0 0
    %629 = vmatpush2.bf16.msra.mxu0 0
    %630 = vmatprep.mubr.bf16.mxu0 0
    %631 = vmatmul.mubr.bf16.gmra.mxu0 %v596
    %v632 = vpop.f32.mrf.mxu0
    %v633 = vadd.f32 %v581, %v632
    %v634 = vpop.f32.mrf.mxu0
    %v635 = vpop.f32.mrf.mxu0
    %v636 = vadd.f32 %v581, %v635
    %v637 = vpop.f32.mrf.mxu0
    %638 = vdwg.mxu0
    %v639 = vld [vmem:[%s6] sm:$0xf]
    %v640 = vld [vmem:[%s6 + $0x4] sm:$0xf]
    %v641 = vld [vmem:[%s6 + $0x8] sm:$0xf]
    %v642 = vld [vmem:[%s6 + $0xc] sm:$0xf]
    %s643 = scalar_lea.vmem %s1, 2
    %v644 = vld [vmem:[%s643] sm:$0x3]
    %v645 = vpack.c.bf16 %v644, %v644
    %v650 = vunpack.c.l.b16 %v639
    %v651 = vunpack.c.l.b16 %v640
    %v652 = vunpack.c.l.b16 %v641
    %v653 = vunpack.c.l.b16 %v642
    %v654 = vpack.c.b16 %v651, %v650
    %v655 = vpack.c.b16 %v653, %v652
    %v659 = vsel %vm161, %v645, 0
    %661 = vmatprep.subr.bf16.mxu0 0
    %662 = vmatpush1.bf16.msra.mxu0 0
    %663 = vmatprep.subr.bf16.mxu0 0
    %664 = vmatpush1.bf16.msra.mxu0 0
    %665 = vmatprep.subr.bf16.mxu0 0
    %666 = vmatpush1.bf16.msra.mxu0 0
    %667 = vmatprep.subr.bf16.mxu0 0
    %668 = vmatpush1.bf16.msra.mxu0 0
    %669 = vmatprep.subr.bf16.mxu0 0
    %670 = vmatpush1.bf16.msra.mxu0 0
    %671 = vmatprep.subr.bf16.mxu0 0
    %672 = vmatpush1.bf16.msra.mxu0 0
    %673 = vmatprep.subr.bf16.mxu0 0
    %674 = vmatpush1.bf16.msra.mxu0 %v655
    %675 = vmatprep.subr.bf16.mxu0 0
    %676 = vmatpush1.bf16.msra.mxu0 %v654
    %677 = vmatprep.subr.bf16.mxu0 0
    %678 = vmatpush2.bf16.msra.mxu0 0
    %679 = vmatprep.subr.bf16.mxu0 0
    %680 = vmatpush2.bf16.msra.mxu0 0
    %681 = vmatprep.subr.bf16.mxu0 0
    %682 = vmatpush2.bf16.msra.mxu0 0
    %683 = vmatprep.subr.bf16.mxu0 0
    %684 = vmatpush2.bf16.msra.mxu0 0
    %685 = vmatprep.subr.bf16.mxu0 0
    %686 = vmatpush2.bf16.msra.mxu0 0
    %687 = vmatprep.subr.bf16.mxu0 0
    %688 = vmatpush2.bf16.msra.mxu0 0
    %689 = vmatprep.subr.bf16.mxu0 0
    %690 = vmatpush2.bf16.msra.mxu0 0
    %691 = vmatprep.subr.bf16.mxu0 0
    %692 = vmatpush2.bf16.msra.mxu0 0
    %693 = vmatprep.mubr.bf16.mxu0 0
    %694 = vmatmul.mubr.bf16.gmra.mxu0 %v659
    %v695 = vpop.f32.mrf.mxu0
    %v696 = vadd.f32 0.0, %v695
    %v697 = vpop.f32.mrf.mxu0
    %v698 = vpop.f32.mrf.mxu0
    %v699 = vpop.f32.mrf.mxu0
    %700 = vdwg.mxu0
    %v701 = vadd.f32 %v633, %v696
    %v702 = vtanh.pop %v701
    %v703 = vpack.c.bf16 %v702, %v702
    %v705 = vsel %vm161, %v703, 0
    %707 = vmatprep.subr.bf16.mxu0 0
    %708 = vmatpush1.bf16.msra.mxu0 0
    %709 = vmatprep.subr.bf16.mxu0 0
    %710 = vmatpush1.bf16.msra.mxu0 0
    %711 = vmatprep.subr.bf16.mxu0 0
    %712 = vmatpush1.bf16.msra.mxu0 0
    %713 = vmatprep.subr.bf16.mxu0 0
    %714 = vmatpush1.bf16.msra.mxu0 0
    %715 = vmatprep.subr.bf16.mxu0 0
    %716 = vmatpush1.bf16.msra.mxu0 0
    %717 = vmatprep.subr.bf16.mxu0 0
    %718 = vmatpush1.bf16.msra.mxu0 0
    %719 = vmatprep.subr.bf16.mxu0 0
    %720 = vmatpush1.bf16.msra.mxu0 %v655
    %721 = vmatprep.subr.bf16.mxu0 0
    %722 = vmatpush1.bf16.msra.mxu0 %v654
    %723 = vmatprep.subr.bf16.mxu0 0
    %724 = vmatpush2.bf16.msra.mxu0 0
    %725 = vmatprep.subr.bf16.mxu0 0
    %726 = vmatpush2.bf16.msra.mxu0 0
    %727 = vmatprep.subr.bf16.mxu0 0
    %728 = vmatpush2.bf16.msra.mxu0 0
    %729 = vmatprep.subr.bf16.mxu0 0
    %730 = vmatpush2.bf16.msra.mxu0 0
    %731 = vmatprep.subr.bf16.mxu0 0
    %732 = vmatpush2.bf16.msra.mxu0 0
    %733 = vmatprep.subr.bf16.mxu0 0
    %734 = vmatpush2.bf16.msra.mxu0 0
    %735 = vmatprep.subr.bf16.mxu0 0
    %736 = vmatpush2.bf16.msra.mxu0 0
    %737 = vmatprep.subr.bf16.mxu0 0
    %738 = vmatpush2.bf16.msra.mxu0 0
    %739 = vmatprep.mubr.bf16.mxu0 0
    %740 = vmatmul.mubr.bf16.gmra.mxu0 %v705
    %v741 = vpop.f32.mrf.mxu0
    %v742 = vadd.f32 0.0, %v741
    %v743 = vpop.f32.mrf.mxu0
    %v744 = vpop.f32.mrf.mxu0
    %v745 = vpop.f32.mrf.mxu0
    %746 = vdwg.mxu0
    %v748 = vrot.slane %v742, 6
    %v750 = vadd.f32 %v633, %v748
    %v751 = vtanh.pop %v750
    %v752 = vpack.c.bf16 %v751, %v751
    %v754 = vrot.slane %v752, 1
    %v756 = vsel %vm161, %v754, 0
    %758 = vmatprep.subr.bf16.mxu0 0
    %759 = vmatpush1.bf16.msra.mxu0 0
    %760 = vmatprep.subr.bf16.mxu0 0
    %761 = vmatpush1.bf16.msra.mxu0 0
    %762 = vmatprep.subr.bf16.mxu0 0
    %763 = vmatpush1.bf16.msra.mxu0 0
    %764 = vmatprep.subr.bf16.mxu0 0
    %765 = vmatpush1.bf16.msra.mxu0 0
    %766 = vmatprep.subr.bf16.mxu0 0
    %767 = vmatpush1.bf16.msra.mxu0 0
    %768 = vmatprep.subr.bf16.mxu0 0
    %769 = vmatpush1.bf16.msra.mxu0 0
    %770 = vmatprep.subr.bf16.mxu0 0
    %771 = vmatpush1.bf16.msra.mxu0 %v655
    %772 = vmatprep.subr.bf16.mxu0 0
    %773 = vmatpush1.bf16.msra.mxu0 %v654
    %774 = vmatprep.subr.bf16.mxu0 0
    %775 = vmatpush2.bf16.msra.mxu0 0
    %776 = vmatprep.subr.bf16.mxu0 0
    %777 = vmatpush2.bf16.msra.mxu0 0
    %778 = vmatprep.subr.bf16.mxu0 0
    %779 = vmatpush2.bf16.msra.mxu0 0
    %780 = vmatprep.subr.bf16.mxu0 0
    %781 = vmatpush2.bf16.msra.mxu0 0
    %782 = vmatprep.subr.bf16.mxu0 0
    %783 = vmatpush2.bf16.msra.mxu0 0
    %784 = vmatprep.subr.bf16.mxu0 0
    %785 = vmatpush2.bf16.msra.mxu0 0
    %786 = vmatprep.subr.bf16.mxu0 0
    %787 = vmatpush2.bf16.msra.mxu0 0
    %788 = vmatprep.subr.bf16.mxu0 0
    %789 = vmatpush2.bf16.msra.mxu0 0
    %790 = vmatprep.mubr.bf16.mxu0 0
    %791 = vmatmul.mubr.bf16.gmra.mxu0 %v756
    %v792 = vpop.f32.mrf.mxu0
    %v793 = vadd.f32 0.0, %v792
    %v794 = vpop.f32.mrf.mxu0
    %v795 = vpop.f32.mrf.mxu0
    %v796 = vpop.f32.mrf.mxu0
    %797 = vdwg.mxu0
    %v799 = vrot.slane %v793, 4
    %v801 = vadd.f32 %v633, %v799
    %v802 = vtanh.pop %v801
    %v803 = vpack.c.bf16 %v802, %v802
    %v805 = vrot.slane %v803, 2
    %v807 = vsel %vm161, %v805, 0
    %809 = vmatprep.subr.bf16.mxu0 0
    %810 = vmatpush1.bf16.msra.mxu0 0
    %811 = vmatprep.subr.bf16.mxu0 0
    %812 = vmatpush1.bf16.msra.mxu0 0
    %813 = vmatprep.subr.bf16.mxu0 0
    %814 = vmatpush1.bf16.msra.mxu0 0
    %815 = vmatprep.subr.bf16.mxu0 0
    %816 = vmatpush1.bf16.msra.mxu0 0
    %817 = vmatprep.subr.bf16.mxu0 0
    %818 = vmatpush1.bf16.msra.mxu0 0
    %819 = vmatprep.subr.bf16.mxu0 0
    %820 = vmatpush1.bf16.msra.mxu0 0
    %821 = vmatprep.subr.bf16.mxu0 0
    %822 = vmatpush1.bf16.msra.mxu0 %v655
    %823 = vmatprep.subr.bf16.mxu0 0
    %824 = vmatpush1.bf16.msra.mxu0 %v654
    %825 = vmatprep.subr.bf16.mxu0 0
    %826 = vmatpush2.bf16.msra.mxu0 0
    %827 = vmatprep.subr.bf16.mxu0 0
    %828 = vmatpush2.bf16.msra.mxu0 0
    %829 = vmatprep.subr.bf16.mxu0 0
    %830 = vmatpush2.bf16.msra.mxu0 0
    %831 = vmatprep.subr.bf16.mxu0 0
    %832 = vmatpush2.bf16.msra.mxu0 0
    %833 = vmatprep.subr.bf16.mxu0 0
    %834 = vmatpush2.bf16.msra.mxu0 0
    %835 = vmatprep.subr.bf16.mxu0 0
    %836 = vmatpush2.bf16.msra.mxu0 0
    %837 = vmatprep.subr.bf16.mxu0 0
    %838 = vmatpush2.bf16.msra.mxu0 0
    %839 = vmatprep.subr.bf16.mxu0 0
    %840 = vmatpush2.bf16.msra.mxu0 0
    %841 = vmatprep.mubr.bf16.mxu0 0
    %842 = vmatmul.mubr.bf16.gmra.mxu0 %v807
    %v843 = vpop.f32.mrf.mxu0
    %v844 = vadd.f32 0.0, %v843
    %v845 = vpop.f32.mrf.mxu0
    %v846 = vpop.f32.mrf.mxu0
    %v847 = vpop.f32.mrf.mxu0
    %848 = vdwg.mxu0
    %v850 = vrot.slane %v844, 2
    %v852 = vadd.f32 %v633, %v850
    %v853 = vtanh.pop %v852
    %v854 = vpack.c.bf16 %v853, %v853
    %v856 = vrot.slane %v854, 3
    %v858 = vsel %vm161, %v856, 0
    %860 = vmatprep.subr.bf16.mxu0 0
    %861 = vmatpush1.bf16.msra.mxu0 0
    %862 = vmatprep.subr.bf16.mxu0 0
    %863 = vmatpush1.bf16.msra.mxu0 0
    %864 = vmatprep.subr.bf16.mxu0 0
    %865 = vmatpush1.bf16.msra.mxu0 0
    %866 = vmatprep.subr.bf16.mxu0 0
    %867 = vmatpush1.bf16.msra.mxu0 0
    %868 = vmatprep.subr.bf16.mxu0 0
    %869 = vmatpush1.bf16.msra.mxu0 0
    %870 = vmatprep.subr.bf16.mxu0 0
    %871 = vmatpush1.bf16.msra.mxu0 0
    %872 = vmatprep.subr.bf16.mxu0 0
    %873 = vmatpush1.bf16.msra.mxu0 %v655
    %874 = vmatprep.subr.bf16.mxu0 0
    %875 = vmatpush1.bf16.msra.mxu0 %v654
    %876 = vmatprep.subr.bf16.mxu0 0
    %877 = vmatpush2.bf16.msra.mxu0 0
    %878 = vmatprep.subr.bf16.mxu0 0
    %879 = vmatpush2.bf16.msra.mxu0 0
    %880 = vmatprep.subr.bf16.mxu0 0
    %881 = vmatpush2.bf16.msra.mxu0 0
    %882 = vmatprep.subr.bf16.mxu0 0
    %883 = vmatpush2.bf16.msra.mxu0 0
    %884 = vmatprep.subr.bf16.mxu0 0
    %885 = vmatpush2.bf16.msra.mxu0 0
    %886 = vmatprep.subr.bf16.mxu0 0
    %887 = vmatpush2.bf16.msra.mxu0 0
    %888 = vmatprep.subr.bf16.mxu0 0
    %889 = vmatpush2.bf16.msra.mxu0 0
    %890 = vmatprep.subr.bf16.mxu0 0
    %891 = vmatpush2.bf16.msra.mxu0 0
    %892 = vmatprep.mubr.bf16.mxu0 0
    %893 = vmatmul.mubr.bf16.gmra.mxu0 %v858
    %v894 = vpop.f32.mrf.mxu0
    %v895 = vadd.f32 0.0, %v894
    %v896 = vpop.f32.mrf.mxu0
    %v897 = vpop.f32.mrf.mxu0
    %v898 = vpop.f32.mrf.mxu0
    %899 = vdwg.mxu0
    %v900 = vadd.f32 %v636, %v895
    %v901 = vtanh.pop %v900
    %v902 = vpack.c.bf16 %v901, %v901
    %v904 = vsel %vm161, %v902, 0
    %906 = vmatprep.subr.bf16.mxu0 0
    %907 = vmatpush1.bf16.msra.mxu0 0
    %908 = vmatprep.subr.bf16.mxu0 0
    %909 = vmatpush1.bf16.msra.mxu0 0
    %910 = vmatprep.subr.bf16.mxu0 0
    %911 = vmatpush1.bf16.msra.mxu0 0
    %912 = vmatprep.subr.bf16.mxu0 0
    %913 = vmatpush1.bf16.msra.mxu0 0
    %914 = vmatprep.subr.bf16.mxu0 0
    %915 = vmatpush1.bf16.msra.mxu0 0
    %916 = vmatprep.subr.bf16.mxu0 0
    %917 = vmatpush1.bf16.msra.mxu0 0
    %918 = vmatprep.subr.bf16.mxu0 0
    %919 = vmatpush1.bf16.msra.mxu0 %v655
    %920 = vmatprep.subr.bf16.mxu0 0
    %921 = vmatpush1.bf16.msra.mxu0 %v654
    %922 = vmatprep.subr.bf16.mxu0 0
    %923 = vmatpush2.bf16.msra.mxu0 0
    %924 = vmatprep.subr.bf16.mxu0 0
    %925 = vmatpush2.bf16.msra.mxu0 0
    %926 = vmatprep.subr.bf16.mxu0 0
    %927 = vmatpush2.bf16.msra.mxu0 0
    %928 = vmatprep.subr.bf16.mxu0 0
    %929 = vmatpush2.bf16.msra.mxu0 0
    %930 = vmatprep.subr.bf16.mxu0 0
    %931 = vmatpush2.bf16.msra.mxu0 0
    %932 = vmatprep.subr.bf16.mxu0 0
    %933 = vmatpush2.bf16.msra.mxu0 0
    %934 = vmatprep.subr.bf16.mxu0 0
    %935 = vmatpush2.bf16.msra.mxu0 0
    %936 = vmatprep.subr.bf16.mxu0 0
    %937 = vmatpush2.bf16.msra.mxu0 0
    %938 = vmatprep.mubr.bf16.mxu0 0
    %939 = vmatmul.mubr.bf16.gmra.mxu0 %v904
    %v940 = vpop.f32.mrf.mxu0
    %v941 = vadd.f32 0.0, %v940
    %v942 = vpop.f32.mrf.mxu0
    %v943 = vpop.f32.mrf.mxu0
    %v944 = vpop.f32.mrf.mxu0
    %945 = vdwg.mxu0
    %v947 = vrot.slane %v941, 6
    %v949 = vadd.f32 %v636, %v947
    %v950 = vtanh.pop %v949
    %v951 = vpack.c.bf16 %v950, %v950
    %v953 = vrot.slane %v951, 1
    %v955 = vsel %vm161, %v953, 0
    %957 = vmatprep.subr.bf16.mxu0 0
    %958 = vmatpush1.bf16.msra.mxu0 0
    %959 = vmatprep.subr.bf16.mxu0 0
    %960 = vmatpush1.bf16.msra.mxu0 0
    %961 = vmatprep.subr.bf16.mxu0 0
    %962 = vmatpush1.bf16.msra.mxu0 0
    %963 = vmatprep.subr.bf16.mxu0 0
    %964 = vmatpush1.bf16.msra.mxu0 0
    %965 = vmatprep.subr.bf16.mxu0 0
    %966 = vmatpush1.bf16.msra.mxu0 0
    %967 = vmatprep.subr.bf16.mxu0 0
    %968 = vmatpush1.bf16.msra.mxu0 0
    %969 = vmatprep.subr.bf16.mxu0 0
    %970 = vmatpush1.bf16.msra.mxu0 %v655
    %971 = vmatprep.subr.bf16.mxu0 0
    %972 = vmatpush1.bf16.msra.mxu0 %v654
    %973 = vmatprep.subr.bf16.mxu0 0
    %974 = vmatpush2.bf16.msra.mxu0 0
    %975 = vmatprep.subr.bf16.mxu0 0
    %976 = vmatpush2.bf16.msra.mxu0 0
    %977 = vmatprep.subr.bf16.mxu0 0
    %978 = vmatpush2.bf16.msra.mxu0 0
    %979 = vmatprep.subr.bf16.mxu0 0
    %980 = vmatpush2.bf16.msra.mxu0 0
    %981 = vmatprep.subr.bf16.mxu0 0
    %982 = vmatpush2.bf16.msra.mxu0 0
    %983 = vmatprep.subr.bf16.mxu0 0
    %984 = vmatpush2.bf16.msra.mxu0 0
    %985 = vmatprep.subr.bf16.mxu0 0
    %986 = vmatpush2.bf16.msra.mxu0 0
    %987 = vmatprep.subr.bf16.mxu0 0
    %988 = vmatpush2.bf16.msra.mxu0 0
    %989 = vmatprep.mubr.bf16.mxu0 0
    %990 = vmatmul.mubr.bf16.gmra.mxu0 %v955
    %v991 = vpop.f32.mrf.mxu0
    %v992 = vadd.f32 0.0, %v991
    %v993 = vpop.f32.mrf.mxu0
    %v994 = vpop.f32.mrf.mxu0
    %v995 = vpop.f32.mrf.mxu0
    %996 = vdwg.mxu0
    %v998 = vrot.slane %v992, 4
    %v1000 = vadd.f32 %v636, %v998
    %v1001 = vtanh.pop %v1000
    %v1002 = vpack.c.bf16 %v1001, %v1001
    %v1004 = vrot.slane %v1002, 2
    %v1006 = vsel %vm161, %v1004, 0
    %1008 = vmatprep.subr.bf16.mxu0 0
    %1009 = vmatpush1.bf16.msra.mxu0 0
    %1010 = vmatprep.subr.bf16.mxu0 0
    %1011 = vmatpush1.bf16.msra.mxu0 0
    %1012 = vmatprep.subr.bf16.mxu0 0
    %1013 = vmatpush1.bf16.msra.mxu0 0
    %1014 = vmatprep.subr.bf16.mxu0 0
    %1015 = vmatpush1.bf16.msra.mxu0 0
    %1016 = vmatprep.subr.bf16.mxu0 0
    %1017 = vmatpush1.bf16.msra.mxu0 0
    %1018 = vmatprep.subr.bf16.mxu0 0
    %1019 = vmatpush1.bf16.msra.mxu0 0
    %1020 = vmatprep.subr.bf16.mxu0 0
    %1021 = vmatpush1.bf16.msra.mxu0 %v655
    %1022 = vmatprep.subr.bf16.mxu0 0
    %1023 = vmatpush1.bf16.msra.mxu0 %v654
    %1024 = vmatprep.subr.bf16.mxu0 0
    %1025 = vmatpush2.bf16.msra.mxu0 0
    %1026 = vmatprep.subr.bf16.mxu0 0
    %1027 = vmatpush2.bf16.msra.mxu0 0
    %1028 = vmatprep.subr.bf16.mxu0 0
    %1029 = vmatpush2.bf16.msra.mxu0 0
    %1030 = vmatprep.subr.bf16.mxu0 0
    %1031 = vmatpush2.bf16.msra.mxu0 0
    %1032 = vmatprep.subr.bf16.mxu0 0
    %1033 = vmatpush2.bf16.msra.mxu0 0
    %1034 = vmatprep.subr.bf16.mxu0 0
    %1035 = vmatpush2.bf16.msra.mxu0 0
    %1036 = vmatprep.subr.bf16.mxu0 0
    %1037 = vmatpush2.bf16.msra.mxu0 0
    %1038 = vmatprep.subr.bf16.mxu0 0
    %1039 = vmatpush2.bf16.msra.mxu0 0
    %1040 = vmatprep.mubr.bf16.mxu0 0
    %1041 = vmatmul.mubr.bf16.gmra.mxu0 %v1006
    %v1042 = vpop.f32.mrf.mxu0
    %v1043 = vadd.f32 0.0, %v1042
    %v1044 = vpop.f32.mrf.mxu0
    %v1045 = vpop.f32.mrf.mxu0
    %v1046 = vpop.f32.mrf.mxu0
    %1047 = vdwg.mxu0
    %v1049 = vrot.slane %v1043, 2
    %v1051 = vadd.f32 %v636, %v1049
    %v1052 = vtanh.pop %v1051
    %v1053 = vpack.c.bf16 %v1052, %v1052
    %v1054 = vld [vmem:[#allocation6] sm:$0xf]
    %v1055 = vld [vmem:[#allocation6 + $0x4] sm:$0xf]
    %v1056 = vld [vmem:[#allocation6 + $0x8] sm:$0xf]
    %v1057 = vld [vmem:[#allocation6 + $0xc] sm:$0xf]
    %v1058 = vld [vmem:[#allocation8] sm:$0x1]
    %v1060 = vlaneseq
    %v1061 = vshrl.u32 %v1060, 7
    %v1062 = vsub.s32 0, %v1061
    %v1063 = vrot.slane %v1058, %v1062
    %v1066 = vrot.slane %v1053, 3
    %v1071 = vunpack.c.l.b16 %v1054
    %v1072 = vunpack.c.l.b16 %v1055
    %v1073 = vunpack.c.l.b16 %v1056
    %v1074 = vunpack.c.l.b16 %v1057
    %v1075 = vpack.c.b16 %v1072, %v1071
    %v1076 = vpack.c.b16 %v1074, %v1073
    %v1080 = vsel %vm161, %v1066, 0
    %1082 = vmatprep.subr.bf16.mxu0 0
    %1083 = vmatpush1.bf16.msra.mxu0 0
    %1084 = vmatprep.subr.bf16.mxu0 0
    %1085 = vmatpush1.bf16.msra.mxu0 0
    %1086 = vmatprep.subr.bf16.mxu0 0
    %1087 = vmatpush1.bf16.msra.mxu0 0
    %1088 = vmatprep.subr.bf16.mxu0 0
    %1089 = vmatpush1.bf16.msra.mxu0 0
    %1090 = vmatprep.subr.bf16.mxu0 0
    %1091 = vmatpush1.bf16.msra.mxu0 0
    %1092 = vmatprep.subr.bf16.mxu0 0
    %1093 = vmatpush1.bf16.msra.mxu0 0
    %1094 = vmatprep.subr.bf16.mxu0 0
    %1095 = vmatpush1.bf16.msra.mxu0 %v1076
    %1096 = vmatprep.subr.bf16.mxu0 0
    %1097 = vmatpush1.bf16.msra.mxu0 %v1075
    %1098 = vmatprep.subr.bf16.mxu0 0
    %1099 = vmatpush2.bf16.msra.mxu0 0
    %1100 = vmatprep.subr.bf16.mxu0 0
    %1101 = vmatpush2.bf16.msra.mxu0 0
    %1102 = vmatprep.subr.bf16.mxu0 0
    %1103 = vmatpush2.bf16.msra.mxu0 0
    %1104 = vmatprep.subr.bf16.mxu0 0
    %1105 = vmatpush2.bf16.msra.mxu0 0
    %1106 = vmatprep.subr.bf16.mxu0 0
    %1107 = vmatpush2.bf16.msra.mxu0 0
    %1108 = vmatprep.subr.bf16.mxu0 0
    %1109 = vmatpush2.bf16.msra.mxu0 0
    %1110 = vmatprep.subr.bf16.mxu0 0
    %1111 = vmatpush2.bf16.msra.mxu0 0
    %1112 = vmatprep.subr.bf16.mxu0 0
    %1113 = vmatpush2.bf16.msra.mxu0 0
    %1114 = vmatprep.mubr.bf16.mxu0 0
    %1115 = vmatmul.mubr.bf16.gmra.mxu0 %v1080
    %v1116 = vpop.f32.mrf.mxu0
    %v1117 = vadd.f32 %v1063, %v1116
    %v1118 = vpop.f32.mrf.mxu0
    %v1119 = vpop.f32.mrf.mxu0
    %v1120 = vpop.f32.mrf.mxu0
    %1121 = vdwg.mxu0
    %1122 = vst [vmem:[#allocation9] sm:$0x3] %v1117
    // Predicated region
    $region54: #{simple_rnn_forward.1} parent=1 // pred_check
      _
    $region55: #{simple_rnn_forward.1} parent=1 // pred_check_branch
      %1124 = sbr.rel (0) target = $region57
    $region56: #{simple_rnn_forward.1} parent=1 // pred_region
      %s1126 = ssub.s32 32, 32
      %1127 = vsyncadd [#allocation5], %s1126
      %s1129 = sshll.u32 [#allocation9], 4
      %s1130 = int_to_ptr.vmem [resolvable:$true] %s1129
      %1132 = dma.vmem_to_hbm [thread:$0]  %s1130, 32, %s10, [#allocation5]
    $region57: #{simple_rnn_forward.1} parent=1 // pred_fallthru
      _
    // Predicated region
    $region58: #{simple_rnn_forward.1} parent=1 // pred_check
      _
    $region59: #{simple_rnn_forward.1} parent=1 // pred_check_branch
      %1134 = sbr.rel (0) target = $region61
    $region60: #{simple_rnn_forward.1} parent=1 // pred_region
      %1135 = dma.done [#allocation5], 32
    $region61: #{simple_rnn_forward.1} parent=1 // pred_fallthru
      _
    %1136 = vsyncpa [#allocation4], 1
    %1137 = vsyncpa [#allocation7], 1
    %1138 = vsyncpa [#allocation5], 1

</llo_original>
